<compile_context>
chip_gen: v5e
topology: v5e:2x2
jax: 0.10.0
libtpu: 0.0.40
codegen_flags: <defaults>
</compile_context>

<pallas_src>
import jax
import jax.numpy as jnp
from jax.experimental import pallas as pl
from jax.experimental.pallas import tpu as pltpu


# --------------------------------------------------------------------------- #
# Kernel
# --------------------------------------------------------------------------- #
def _segregated_matmul_kernel(x_ref, w_ref, b_ref, o_ref, acc_ref):
    # x_ref:   (tile_b, tile_k)   activations for one sublayer-group / batch tile
    # w_ref:   (tile_k, tile_n)   (block-diagonal) weight tile
    # b_ref:   (1, tile_n)        bias tile
    # o_ref:   (tile_b, tile_n)   output tile
    # acc_ref: (tile_b, tile_n)   f32 accumulator (scratch, resident across K)
    k = pl.program_id(3)

    @pl.when(k == 0)
    def _():
        acc_ref[...] = jnp.zeros_like(acc_ref)

    acc_ref[...] += jnp.dot(x_ref[...], w_ref[...],
                            preferred_element_type=jnp.float32)

    @pl.when(k == pl.num_programs(3) - 1)
    def _():
        o_ref[...] = (acc_ref[...] + b_ref[...].astype(jnp.float32)
                      ).astype(o_ref.dtype)


# --------------------------------------------------------------------------- #
# Tiling / packing heuristics
# --------------------------------------------------------------------------- #
def _vmem_budget_bytes():
    """Generation-aware VMEM budget (same number feeds tiling AND vmem_limit)."""
    cap = 128 * 1024 * 1024
    try:
        info = pltpu.get_tpu_info()
        cap = int(getattr(info, "vmem_capacity_bytes", cap))
    except Exception:
        pass
    # ~3/4 of physical, capped at 100 MiB: ~96 MiB on v5e/v6e, ~48 MiB on v7x.
    return min(int(cap * 3 // 4), 100 * 1024 * 1024)


def _pick_group(S, I, O, itemsize):
    """How many sublayers to fuse per grid step via block-diagonal weights."""
    if O >= 128 or S == 1:
        return 1                      # output already lane-dense / nothing to pack
    target = max(1, 256 // O)         # aim for ~256 output lanes (v6e/v7x MXU width)
    best = 1
    for g in range(1, S + 1):
        if S % g:
            continue
        if g > target:
            break
        if (g * I) * (g * O) * itemsize > (2 << 20):   # keep padded weight tiny
            break
        best = g
    return best


def _pack_block_diag(weight, bias, g):
    """weight [S,I,O], bias [S,O] -> block-diag [S/g, g*I, g*O], [S/g, 1, g*O]."""
    S, I, O = weight.shape
    if g == 1:
        return weight, bias.reshape(S, 1, O)
    S_eff = S // g
    w = weight.reshape(S_eff, g, I, O)
    eye = jnp.eye(g, dtype=weight.dtype)
    wbd = jnp.einsum("sgio,gh->sgiho", w, eye).reshape(S_eff, g * I, g * O)
    bbd = bias.reshape(S_eff, 1, g * O)
    return wbd, bbd


def _split_dim(full, align, cap):
    """Block size for a minor dim: the full dim if it fits under `cap`, else the
    largest multiple of `align` that divides `full` (keeps edge blocks exact)."""
    if full <= cap:
        return full
    best = None
    m = align
    while m <= cap:
        if full % m == 0:
            best = m
        m += align
    return best if best is not None else full


def _pick_tiles(B, I_eff, O_eff, itemsize, budget):
    tile_k = _split_dim(I_eff, 128, 2048)   # contraction tile (multiple of 128 or full)
    tile_n = _split_dim(O_eff, 128, 1024)   # lane-dense output tile
    fixed = 2 * (tile_k * tile_n + tile_n) * itemsize           # W + bias, double-buffered
    per_row = 2 * (tile_k + tile_n) * itemsize + 4 * tile_n     # x + y (dbl) + f32 acc
    tile_b = (budget - fixed) // max(per_row, 1)
    tile_b = int(min(tile_b, 1024, B))
    if tile_b >= 8:
        tile_b = (tile_b // 8) * 8          # sublane-aligned
    else:
        tile_b = B                          # full-dim block is always layout-legal
    return max(tile_b, 1), tile_k, tile_n


# --------------------------------------------------------------------------- #
# Wrapper
# --------------------------------------------------------------------------- #
def linear_segregated(x, weight, bias, *, vmem_budget_bytes=None):
    """LinearSegregated forward (cnn=False path).

    x:      [B, S, I]   activations (S = number_sublayers)
    weight: [S, I, O]   per-sublayer weights (grouped Conv1d, kernel_size=1)
    bias:   [S, O]      per-sublayer bias
    returns [B, S, O]
    """
    B, S, I = x.shape
    S_w, I_w, O = weight.shape
    assert (S_w, I_w) == (S, I), "weight shape must be [S, I, O]"
    assert bias.shape == (S, O), "bias shape must be [S, O]"

    itemsize = jnp.dtype(x.dtype).itemsize
    if vmem_budget_bytes is None:
        vmem_budget_bytes = _vmem_budget_bytes()

    # --- sublayer packing (lane-dense output when O < 128) -------------------
    g = _pick_group(S, I, O, itemsize)
    S_eff, I_eff, O_eff = S // g, g * I, g * O
    w_p, b_p = _pack_block_diag(weight, bias, g)       # [S_eff,I_eff,O_eff], [S_eff,1,O_eff]

    # x regrouping is a free view; the leading-axis transpose is pure metadata
    # when S_eff == 1 (the common case after packing).
    x_p = x.reshape(B, S_eff, I_eff)
    x_t = jnp.transpose(x_p, (1, 0, 2))                # [S_eff, B, I_eff]

    tile_b, tile_k, tile_n = _pick_tiles(B, I_eff, O_eff, itemsize,
                                         vmem_budget_bytes)

    grid = (S_eff, pl.cdiv(B, tile_b), O_eff // tile_n, I_eff // tile_k)

    cost = pl.CostEstimate(
        flops=2 * B * S_eff * I_eff * O_eff,
        transcendentals=0,
        bytes_accessed=(B * S_eff * (I_eff + O_eff)
                        + S_eff * I_eff * O_eff + S_eff * O_eff) * itemsize,
    )

    out_t = pl.pallas_call(
        _segregated_matmul_kernel,
        out_shape=jax.ShapeDtypeStruct((S_eff, B, O_eff), x.dtype),
        grid_spec=pltpu.PrefetchScalarGridSpec(
            num_scalar_prefetch=0,
            grid=grid,
            in_specs=[
                # activations: resident weight sees many batch tiles (b inner of s)
                pl.BlockSpec((None, tile_b, tile_k), lambda s, b, n, k: (s, b, k)),
                # (block-diagonal) weight tile
                pl.BlockSpec((None, tile_k, tile_n), lambda s, b, n, k: (s, k, n)),
                # bias tile
                pl.BlockSpec((None, 1, tile_n), lambda s, b, n, k: (s, 0, n)),
            ],
            out_specs=pl.BlockSpec((None, tile_b, tile_n),
                                   lambda s, b, n, k: (s, b, n)),
            scratch_shapes=[pltpu.VMEM((tile_b, tile_n), jnp.float32)],
        ),
        compiler_params=pltpu.CompilerParams(
            dimension_semantics=("parallel", "parallel", "parallel", "arbitrary"),
            vmem_limit_bytes=int(vmem_budget_bytes),
        ),
        cost_estimate=cost,
    )(x_t, w_p, b_p)

    out = jnp.transpose(out_t, (1, 0, 2))              # free when S_eff == 1
    return out.reshape(B, S, O)


# --------------------------------------------------------------------------- #
# Self-test
# --------------------------------------------------------------------------- #
def _reference(x, weight, bias):
    # Pure-JAX reference mirroring the PyTorch grouped-Conv1d forward exactly.
    return jnp.einsum("bsi,sio->bso", x, weight) + bias[None, :, :]


def _run_case(key, B, S, I, O):
    kx, kw, kb = jax.random.split(key, 3)
    x = jax.random.normal(kx, (B, S, I), dtype=jnp.float32)
    weight = jax.random.normal(kw, (S, I, O), dtype=jnp.float32) * (1.0 / jnp.sqrt(I))
    bias = jax.random.normal(kb, (S, O), dtype=jnp.float32) * 0.1

    out = jax.block_until_ready(linear_segregated(x, weight, bias))
    ref = _reference(x, weight, bias)
    assert out.shape == (B, S, O)
    assert jnp.allclose(out, ref, atol=1e-5, rtol=1e-5), \
        f"mismatch vs reference for shape B={B} S={S} I={I} O={O}"


if __name__ == "__main__":
    key = jax.random.PRNGKey(0)
    k1, k2 = jax.random.split(key)

    # Module-default-like tiny shapes (collapses to a single grid step, fully packed).
    _run_case(k1, B=8, S=2, I=16, O=32)
    # Multi-group case (S_eff > 1 after packing) to exercise the grid over sublayers.
    _run_case(k2, B=16, S=4, I=24, O=96)

    print("KERNEL_OK")
</pallas_src>

<mosaic_0001>
module attributes {stable_mosaic.version = 11 : i64} {
  func.func @_segregated_matmul_kernel(%arg0: i32, %arg1: i32, %arg2: i32, %arg3: i32, %arg4: memref<1x8x32xf32, #tpu.memory_space<vmem>>, %arg5: memref<1x32x64xf32, #tpu.memory_space<vmem>>, %arg6: memref<1x1x64xf32, #tpu.memory_space<vmem>>, %arg7: memref<1x8x64xf32, #tpu.memory_space<vmem>>, %arg8: memref<8x64xf32, #tpu.memory_space<vmem>>) attributes {dimension_semantics = [#tpu.dimension_semantics<parallel>, #tpu.dimension_semantics<parallel>, #tpu.dimension_semantics<parallel>, #tpu.dimension_semantics<arbitrary>], iteration_bounds = array<i64: 1, 1, 1, 1>, scalar_prefetch = 0 : i64, scratch_operands = 1 : i64, tpu.core_type = #tpu.core_type<tc>, window_params = [{transform_indices = @transform_0, window_bounds = array<i64: 1, 8, 32>}, {transform_indices = @transform_1, window_bounds = array<i64: 1, 32, 64>}, {transform_indices = @transform_2, window_bounds = array<i64: 1, 1, 64>}, {transform_indices = @transform_3, window_bounds = array<i64: 1, 8, 64>}]} {
    %c0_i32 = arith.constant 0 : i32
    %0 = arith.cmpi eq, %arg3, %c0_i32 : i32
    %1 = arith.extui %0 : i1 to i32
    %c0_i32_0 = arith.constant 0 : i32
    %2 = arith.cmpi ne, %1, %c0_i32_0 : i32
    scf.if %2 {
      %cst_12 = arith.constant 0.000000e+00 : f32
      %14 = vector.broadcast %cst_12 : f32 to vector<8x64xf32>
      %c0_13 = arith.constant 0 : index
      %c0_14 = arith.constant 0 : index
      %15 = vector.load %arg8[%c0_13, %c0_14] : memref<8x64xf32, #tpu.memory_space<vmem>>, vector<8x64xf32>
      tpu.vector_store %arg8[%c0_13, %c0_14], %14 {strides = array<i32>} : memref<8x64xf32, #tpu.memory_space<vmem>>, vector<8x64xf32>,
    } else {
    }
    %c0 = arith.constant 0 : index
    %c0_1 = arith.constant 0 : index
    %3 = vector.load %arg8[%c0, %c0_1] : memref<8x64xf32, #tpu.memory_space<vmem>>, vector<8x64xf32>
    %c0_2 = arith.constant 0 : index
    %c0_3 = arith.constant 0 : index
    %c0_4 = arith.constant 0 : index
    %4 = vector.load %arg4[%c0_2, %c0_3, %c0_4] : memref<1x8x32xf32, #tpu.memory_space<vmem>>, vector<1x8x32xf32>
    %5 = vector.shape_cast %4 : vector<1x8x32xf32> to vector<8x32xf32>
    %c0_5 = arith.constant 0 : index
    %c0_6 = arith.constant 0 : index
    %c0_7 = arith.constant 0 : index
    %6 = vector.load %arg5[%c0_5, %c0_6, %c0_7] : memref<1x32x64xf32, #tpu.memory_space<vmem>>, vector<1x32x64xf32>
    %7 = vector.shape_cast %6 : vector<1x32x64xf32> to vector<32x64xf32>
    %cst = arith.constant dense<0.000000e+00> : vector<8x64xf32>
    %8 = tpu.matmul %5, %7, %cst {dimension_numbers = #tpu.dot_dimension_numbers<[1], [0], [0], [1], [0, 0, 1, 1], [], []>} : vector<8x32xf32>, vector<32x64xf32>, vector<8x64xf32> -> vector<8x64xf32>
    %9 = arith.addf %3, %8 : vector<8x64xf32>
    %c0_8 = arith.constant 0 : index
    %c0_9 = arith.constant 0 : index
    %10 = vector.load %arg8[%c0_8, %c0_9] : memref<8x64xf32, #tpu.memory_space<vmem>>, vector<8x64xf32>
    tpu.vector_store %arg8[%c0_8, %c0_9], %9 {strides = array<i32>} : memref<8x64xf32, #tpu.memory_space<vmem>>, vector<8x64xf32>,
    %c0_i32_10 = arith.constant 0 : i32
    %11 = arith.cmpi eq, %arg3, %c0_i32_10 : i32
    %12 = arith.extui %11 : i1 to i32
    %c0_i32_11 = arith.constant 0 : i32
    %13 = arith.cmpi ne, %12, %c0_i32_11 : i32
    scf.if %13 {
      %c0_12 = arith.constant 0 : index
      %c0_13 = arith.constant 0 : index
      %14 = vector.load %arg8[%c0_12, %c0_13] : memref<8x64xf32, #tpu.memory_space<vmem>>, vector<8x64xf32>
      %c0_14 = arith.constant 0 : index
      %c0_15 = arith.constant 0 : index
      %c0_16 = arith.constant 0 : index
      %15 = vector.load %arg6[%c0_14, %c0_15, %c0_16] : memref<1x1x64xf32, #tpu.memory_space<vmem>>, vector<1x1x64xf32>
      %16 = vector.shape_cast %15 : vector<1x1x64xf32> to vector<1x64xf32>
      %17 = vector.broadcast %16 : vector<1x64xf32> to vector<8x64xf32>
      %18 = arith.addf %14, %17 : vector<8x64xf32>
      %c0_17 = arith.constant 0 : index
      %c0_18 = arith.constant 0 : index
      %c0_19 = arith.constant 0 : index
      %19 = vector.load %arg7[%c0_17, %c0_18, %c0_19] : memref<1x8x64xf32, #tpu.memory_space<vmem>>, vector<1x8x64xf32>
      %20 = vector.shape_cast %19 : vector<1x8x64xf32> to vector<8x64xf32>
      %21 = vector.shape_cast %18 : vector<8x64xf32> to vector<1x8x64xf32>
      tpu.vector_store %arg7[%c0_17, %c0_18, %c0_19], %21 {strides = array<i32>} : memref<1x8x64xf32, #tpu.memory_space<vmem>>, vector<1x8x64xf32>,
    } else {
    }
    return
  }
  func.func @transform_0(%arg0: i32, %arg1: i32, %arg2: i32, %arg3: i32) -> (i32, i32, i32) {
    %c0_i32 = arith.constant 0 : i32
    return %arg0, %arg1, %arg3 : i32, i32, i32
  }
  func.func @transform_1(%arg0: i32, %arg1: i32, %arg2: i32, %arg3: i32) -> (i32, i32, i32) {
    %c0_i32 = arith.constant 0 : i32
    return %arg0, %arg3, %arg2 : i32, i32, i32
  }
  func.func @transform_2(%arg0: i32, %arg1: i32, %arg2: i32, %arg3: i32) -> (i32, i32, i32) {
    %c0_i32 = arith.constant 0 : i32
    %c0_i32_0 = arith.constant 0 : i32
    return %arg0, %c0_i32, %arg2 : i32, i32, i32
  }
  func.func @transform_3(%arg0: i32, %arg1: i32, %arg2: i32, %arg3: i32) -> (i32, i32, i32) {
    %c0_i32 = arith.constant 0 : i32
    return %arg0, %arg1, %arg2 : i32, i32, i32
  }
}

</mosaic_0001>

<llo_original>
// kernel: tpu_custom_call.1
$region0: #{tpu_custom_call.1}
  #allocation0 [shape = 'u32[]', space=smem, size = 0x4, offset = 0x4, fixed_abs, tag = 'smem constant byte address 0x4 - core index']
  #allocation1 [shape = 'u32[72,128]{1,0:T(1,128)}', space=vmem, size = 0x9000, scoped, tag = 'internal scratch']
  #allocation2 [shape = 'f32[8,64]{1,0:T(8,128)}', space=vmem, size = 0x1000, scoped, tag = 'scratch operand']
  %s0 = inlined_call_operand.hbm [shape: f32[1,8,32], index: 0, kind: input, shape index: {}]
  %s1 = inlined_call_operand.hbm [shape: f32[1,32,64], index: 1, kind: input, shape index: {}]
  %s2 = inlined_call_operand.vmem [shape: f32[1,1,64], index: 2, kind: input, shape index: {}]
  %s3 = inlined_call_operand.hbm [shape: f32[1,8,64], index: 3, kind: output, shape index: {}]
  %s4 = sld [smem:[#allocation0]]
  $region38: #{tpu_custom_call.1} parent=0
    _
  %s6 = ssub.s32 1, %s4
  %s7 = scalar_select 0, %s6, %s4
  $region1: #{tpu_custom_call.1} parent=0
    #allocation3 [shape = 'u8[4096]{0}', space=vmem, size = 0x1000, scoped, tag = 'input window, operand 0, single buffered']
    #allocation4 [shape = 's32[1]{0}', space=sflag, size = 0x4, scoped, tag = 'scoped memory for tpu_custom_call.1']
    #allocation5 [shape = 's32[1]{0}', space=sflag, size = 0x4, scoped, tag = 'scoped memory for tpu_custom_call.1']
    #allocation6 [shape = 'u8[16384]{0}', space=vmem, size = 0x4000, scoped, tag = 'input window, operand 1, single buffered']
    #allocation7 [shape = 's32[1]{0}', space=sflag, size = 0x4, scoped, tag = 'scoped memory for tpu_custom_call.1']
    #allocation8 [shape = 'u8[4096]{0}', space=vmem, size = 0x1000, scoped, tag = 'output window, operand 0, single buffered']
    %8 = vsyncpa [#allocation4], 0
    %9 = vsyncpa [#allocation7], 0
    %10 = vsyncpa [#allocation5], 0
    // Predicated region
    $region2: #{tpu_custom_call.1} parent=1 // pred_check
      _
    $region3: #{tpu_custom_call.1} parent=1 // pred_check_branch
      %12 = sbr.rel (0) target = $region5
    $region4: #{tpu_custom_call.1} parent=1 // pred_region
      %14 = vsyncadd [#allocation4], 0
      %s16 = sshll.u32 %s0, 4
      %s17 = int_to_ptr.hbm [resolvable:$true] %s16
      %s18 = sshll.u32 [#allocation3], 4
      %s19 = int_to_ptr.vmem [resolvable:$true] %s18
      %21 = dma.hbm_to_vmem [thread:$0]  %s17, 128, %s19, [#allocation4]
    $region5: #{tpu_custom_call.1} parent=1 // pred_fallthru
      _
    // Predicated region
    $region6: #{tpu_custom_call.1} parent=1 // pred_check
      _
    $region7: #{tpu_custom_call.1} parent=1 // pred_check_branch
      %23 = sbr.rel (0) target = $region9
    $region8: #{tpu_custom_call.1} parent=1 // pred_region
      %25 = vsyncadd [#allocation7], 0
      %s26 = sshll.u32 %s1, 4
      %s27 = int_to_ptr.hbm [resolvable:$true] %s26
      %s28 = sshll.u32 [#allocation6], 4
      %s29 = int_to_ptr.vmem [resolvable:$true] %s28
      %34 = dma.hbm_to_vmem [thread:$0]  %s27, 512, %s29, [#allocation7], 128, 128, 8
    $region9: #{tpu_custom_call.1} parent=1 // pred_fallthru
      _
    // Predicated region
    $region10: #{tpu_custom_call.1} parent=1 // pred_check
      _
    $region11: #{tpu_custom_call.1} parent=1 // pred_check_branch
      %36 = sbr.rel (0) target = $region13
    $region12: #{tpu_custom_call.1} parent=1 // pred_region
      _
    $region13: #{tpu_custom_call.1} parent=1 // pred_fallthru
      _
    // Predicated region
    $region14: #{tpu_custom_call.1} parent=1 // pred_check
      _
    $region15: #{tpu_custom_call.1} parent=1 // pred_check_branch
      %38 = sbr.rel (0) target = $region17
    $region16: #{tpu_custom_call.1} parent=1 // pred_region
      %40 = dma.done [#allocation4], 128
    $region17: #{tpu_custom_call.1} parent=1 // pred_fallthru
      _
    // Predicated region
    $region18: #{tpu_custom_call.1} parent=1 // pred_check
      _
    $region19: #{tpu_custom_call.1} parent=1 // pred_check_branch
      %42 = sbr.rel (0) target = $region21
    $region20: #{tpu_custom_call.1} parent=1 // pred_region
      %44 = dma.done [#allocation7], 512
    $region21: #{tpu_custom_call.1} parent=1 // pred_fallthru
      _
    %p45 = scmp.eq.s32.totalorder 0, 0
    // Predicated region
    $region22: #{tpu_custom_call.1} parent=1 // pred_check
      %p46 = pneg %p45
    $region23: #{tpu_custom_call.1} parent=1 // pred_check_branch
      %48 = sbr.rel (%p46) target = $region25
    $region24: #{tpu_custom_call.1} parent=1 // pred_region
      %vm49 = vcmask 523264
      %50 = vst.msk [vmem:[#allocation2] sm:$0xff] %vm49, 0.0
    $region25: #{tpu_custom_call.1} parent=1 // pred_fallthru
      _
    %v51 = vld [vmem:[#allocation2] sm:$0xff]
    %v52 = vld [vmem:[#allocation3] sm:$0xff]
    %v53 = vld [vmem:[#allocation6] sm:$0xff]
    %v54 = vld [vmem:[#allocation6 + $0x8] sm:$0xff]
    %v55 = vld [vmem:[#allocation6 + $0x10] sm:$0xff]
    %v56 = vld [vmem:[#allocation6 + $0x18] sm:$0xff]
    %vm57 = vcmask 261120
    %v59 = vsel %vm57, %v52, 0
    %61 = vmatpush.msra.mxu0 0.0
    %62 = vmatpush.msra.mxu0 0.0
    %63 = vmatpush.msra.mxu0 0.0
    %64 = vmatpush.msra.mxu0 0.0
    %65 = vmatpush.msra.mxu0 0.0
    %66 = vmatpush.msra.mxu0 0.0
    %67 = vmatpush.msra.mxu0 0.0
    %68 = vmatpush.msra.mxu0 0.0
    %69 = vmatpush.msra.mxu0 0.0
    %70 = vmatpush.msra.mxu0 0.0
    %71 = vmatpush.msra.mxu0 0.0
    %72 = vmatpush.msra.mxu0 0.0
    %73 = vmatpush.msra.mxu0 %v56
    %74 = vmatpush.msra.mxu0 %v55
    %75 = vmatpush.msra.mxu0 %v54
    %76 = vmatpush.msra.mxu0 %v53
    %77 = vmatmul.f32.gmra.mxu0 %v59
    %v78 = vpop.f32.mrf.mxu0
    %v79 = vadd.f32 0.0, %v78
    %80 = vdwg.mxu0
    %v81 = vadd.f32 %v51, %v79
    %vm82 = vcmask 523264
    %83 = vst.msk [vmem:[#allocation2] sm:$0xff] %vm82, %v81
    // Predicated region
    $region26: #{tpu_custom_call.1} parent=1 // pred_check
      %p84 = pneg %p45
    $region27: #{tpu_custom_call.1} parent=1 // pred_check_branch
      %86 = sbr.rel (%p84) target = $region29
    $region28: #{tpu_custom_call.1} parent=1 // pred_region
      %v87 = vld [vmem:[#allocation2] sm:$0xff]
      %v88 = vld [vmem:[%s2] sm:$0x1]
      %v90 = vperm.slane %v88, 0
      %v92 = vadd.f32 %v87, %v90
      %93 = vst.msk [vmem:[#allocation8] sm:$0xff] %vm82, %v92
    $region29: #{tpu_custom_call.1} parent=1 // pred_fallthru
      _
    // Predicated region
    $region30: #{tpu_custom_call.1} parent=1 // pred_check
      _
    $region31: #{tpu_custom_call.1} parent=1 // pred_check_branch
      %95 = sbr.rel (0) target = $region33
    $region32: #{tpu_custom_call.1} parent=1 // pred_region
      %97 = vsyncadd [#allocation5], 0
      %s99 = sshll.u32 [#allocation8], 4
      %s100 = int_to_ptr.vmem [resolvable:$true] %s99
      %s101 = sshll.u32 %s3, 4
      %s102 = int_to_ptr.hbm [resolvable:$true] %s101
      %104 = dma.vmem_to_hbm [thread:$0]  %s100, 128, %s102, [#allocation5]
    $region33: #{tpu_custom_call.1} parent=1 // pred_fallthru
      _
    // Predicated region
    $region34: #{tpu_custom_call.1} parent=1 // pred_check
      _
    $region35: #{tpu_custom_call.1} parent=1 // pred_check_branch
      %106 = sbr.rel (0) target = $region37
    $region36: #{tpu_custom_call.1} parent=1 // pred_region
      %108 = dma.done [#allocation5], 128
    $region37: #{tpu_custom_call.1} parent=1 // pred_fallthru
      _
    %109 = vsyncpa [#allocation4], 1
    %110 = vsyncpa [#allocation7], 1
    %111 = vsyncpa [#allocation5], 1

</llo_original>
